<compile_context>
chip_gen: v5e
topology: v5e:2x2
jax: 0.10.0
libtpu: 0.0.40
codegen_flags: <defaults>
</compile_context>

<pallas_src>
import functools

import jax
import jax.numpy as jnp
from jax.experimental import pallas as pl
from jax.experimental.pallas import tpu as pltpu

# ----------------------------- problem sizes --------------------------------
BATCH = 8
INPUT_SIZE = 32        # backcast length (input_size)
FORECAST_SIZE = 16     # forecast length
LAYERS = 4             # Linear+ReLU layers per block
LAYER_SIZE = 64        # hidden width
NUM_HIDDEN = LAYERS - 1
NUM_BLOCKS = 3         # blocks in the NBeatsUnivariable stack
TILE_B_MAX = 4096      # batch tile upper bound (kernel is overhead-bound; go big)


# ------------------------------- kernel --------------------------------------
def nbeats_kernel(x_ref, w_in_ref, b_in_ref, w_hid_ref, b_hid_ref,
                  w_back_ref, b_back_ref, w_fore_ref, b_fore_ref,
                  fore_ref, *, num_blocks, num_hidden):
    # Residual and forecast stay in vregs for the whole (static) block loop.
    resid = x_ref[...]
    fore = jnp.zeros(fore_ref.shape, jnp.float32)

    for blk in range(num_blocks):                     # static unroll over blocks
        # MLP trunk: bf16 matmuls on the MXU, f32 accumulation, f32 biases.
        h = jnp.dot(resid.astype(jnp.bfloat16), w_in_ref[blk],
                    preferred_element_type=jnp.float32)
        h = jnp.maximum(h + b_in_ref[blk], 0.0)
        for l in range(num_hidden):                   # static unroll (3 layers)
            idx = blk * num_hidden + l
            h = jnp.dot(h.astype(jnp.bfloat16), w_hid_ref[idx],
                        preferred_element_type=jnp.float32)
            h = jnp.maximum(h + b_hid_ref[idx], 0.0)

        # GenericBasis via split backcast/forecast weights (lane-0 aligned outputs).
        h16 = h.astype(jnp.bfloat16)
        backcast = jnp.dot(h16, w_back_ref[blk],
                           preferred_element_type=jnp.float32) + b_back_ref[blk]
        block_fore = jnp.dot(h16, w_fore_ref[blk],
                             preferred_element_type=jnp.float32) + b_fore_ref[blk]

        # NBeatsUnivariable recurrence (values, not refs).
        resid = resid - backcast
        fore = fore + block_fore

    # Single store of the accumulated forecast per batch tile.
    fore_ref[...] = fore


# ------------------------------- wrapper --------------------------------------
def _pick_tile_b(B):
    tile = min(TILE_B_MAX, B)
    # When the batch is big, keep >= 2 batch tiles so v7x's two TensorCores both
    # get work from the "parallel" grid axis (zero cost on v5e/v6e).
    if B >= 512 and tile == B:
        tile = (B // 2) // 8 * 8
    return max(8, tile)


def nbeats_forward(x, params, *, tile_b=None):
    """x: [B, INPUT_SIZE] f32 -> forecast [B, FORECAST_SIZE] f32 (full stack fused)."""
    (w_in, b_in, w_hid, b_hid, w_back, b_back, w_fore, b_fore) = params
    B = x.shape[0]
    if tile_b is None:
        tile_b = _pick_tile_b(B)
    assert tile_b % 8 == 0 and B % tile_b == 0, "batch must tile evenly in sublane units"

    kernel = functools.partial(nbeats_kernel, num_blocks=NUM_BLOCKS,
                               num_hidden=NUM_HIDDEN)

    def full_spec(shape):
        # Whole array resident in VMEM, fetched once (constant block index).
        return pl.BlockSpec(shape, lambda i, _n=len(shape): (0,) * _n)

    weight_bytes = sum(int(a.size) * a.dtype.itemsize
                       for a in (w_in, b_in, w_hid, b_hid,
                                 w_back, b_back, w_fore, b_fore))
    flops = 2 * B * NUM_BLOCKS * (
        INPUT_SIZE * LAYER_SIZE
        + NUM_HIDDEN * LAYER_SIZE * LAYER_SIZE
        + LAYER_SIZE * (INPUT_SIZE + FORECAST_SIZE))
    cost = pl.CostEstimate(
        flops=flops,
        transcendentals=0,
        bytes_accessed=int(x.size) * 4 + B * FORECAST_SIZE * 4 + weight_bytes)

    return pl.pallas_call(
        kernel,
        out_shape=jax.ShapeDtypeStruct((B, FORECAST_SIZE), jnp.float32),
        grid_spec=pl.GridSpec(
            grid=(B // tile_b,),
            in_specs=[
                # x: tiled over the batch axis only
                pl.BlockSpec((tile_b, INPUT_SIZE), lambda i: (i, 0)),
                # all per-block weights/biases: fully resident, fetched once
                full_spec(w_in.shape), full_spec(b_in.shape),
                full_spec(w_hid.shape), full_spec(b_hid.shape),
                full_spec(w_back.shape), full_spec(b_back.shape),
                full_spec(w_fore.shape), full_spec(b_fore.shape),
            ],
            out_specs=pl.BlockSpec((tile_b, FORECAST_SIZE), lambda i: (i, 0)),
        ),
        compiler_params=pltpu.CompilerParams(
            dimension_semantics=("parallel",)),
        cost_estimate=cost,
    )(x, w_in, b_in, w_hid, b_hid, w_back, b_back, w_fore, b_fore)


# ----------------------------- param init ------------------------------------
def init_params(key):
    ks = jax.random.split(key, 8)
    s_in = 1.0 / jnp.sqrt(INPUT_SIZE)
    s_h = 1.0 / jnp.sqrt(LAYER_SIZE)
    u = lambda k, shape, s: jax.random.uniform(k, shape, jnp.float32, -s, s)
    # weights stored bf16 (MXU-native); biases stay f32 (added after f32 accumulation)
    w_in = u(ks[0], (NUM_BLOCKS, INPUT_SIZE, LAYER_SIZE), s_in).astype(jnp.bfloat16)
    b_in = u(ks[1], (NUM_BLOCKS, 1, LAYER_SIZE), s_in)
    # hidden layers stacked flat on a single leading axis: index = blk*NUM_HIDDEN + l
    w_hid = u(ks[2], (NUM_BLOCKS * NUM_HIDDEN, LAYER_SIZE, LAYER_SIZE),
              s_h).astype(jnp.bfloat16)
    b_hid = u(ks[3], (NUM_BLOCKS * NUM_HIDDEN, 1, LAYER_SIZE), s_h)
    w_back = u(ks[4], (NUM_BLOCKS, LAYER_SIZE, INPUT_SIZE), s_h).astype(jnp.bfloat16)
    b_back = u(ks[5], (NUM_BLOCKS, 1, INPUT_SIZE), s_h)
    w_fore = u(ks[6], (NUM_BLOCKS, LAYER_SIZE, FORECAST_SIZE), s_h).astype(jnp.bfloat16)
    b_fore = u(ks[7], (NUM_BLOCKS, 1, FORECAST_SIZE), s_h)
    return (w_in, b_in, w_hid, b_hid, w_back, b_back, w_fore, b_fore)


def reference(x, params):
    """Pure-JAX reference of NBeatsUnivariable forward (same bf16 matmul / f32 acc)."""
    (w_in, b_in, w_hid, b_hid, w_back, b_back, w_fore, b_fore) = params
    resid = x
    fore = jnp.zeros((x.shape[0], FORECAST_SIZE), jnp.float32)
    for blk in range(NUM_BLOCKS):
        h = jnp.dot(resid.astype(jnp.bfloat16), w_in[blk],
                    preferred_element_type=jnp.float32)
        h = jnp.maximum(h + b_in[blk], 0.0)
        for l in range(NUM_HIDDEN):
            idx = blk * NUM_HIDDEN + l
            h = jnp.dot(h.astype(jnp.bfloat16), w_hid[idx],
                        preferred_element_type=jnp.float32)
            h = jnp.maximum(h + b_hid[idx], 0.0)
        h16 = h.astype(jnp.bfloat16)
        backcast = jnp.dot(h16, w_back[blk], preferred_element_type=jnp.float32) + b_back[blk]
        block_fore = jnp.dot(h16, w_fore[blk], preferred_element_type=jnp.float32) + b_fore[blk]
        resid = resid - backcast
        fore = fore + block_fore
    return fore


# --------------------------------- main ---------------------------------------
if __name__ == "__main__":
    key = jax.random.PRNGKey(0)
    kx, kp = jax.random.split(key)
    x = jax.random.normal(kx, (BATCH, INPUT_SIZE), jnp.float32)
    params = init_params(kp)

    forecast = nbeats_forward(x, params)
    jax.block_until_ready(forecast)

    ref_fore = reference(x, params)
    assert forecast.shape == (BATCH, FORECAST_SIZE)
    assert jnp.allclose(forecast, ref_fore, atol=1e-2, rtol=1e-2), (
        jnp.max(jnp.abs(forecast - ref_fore)))

    print("KERNEL_OK")
</pallas_src>

<mosaic_0001>
module attributes {stable_mosaic.version = 11 : i64} {
  func.func @nbeats_kernel(%arg0: i32, %arg1: memref<8x32xf32, #tpu.memory_space<vmem>>, %arg2: memref<3x32x64xbf16, #tpu.memory_space<vmem>>, %arg3: memref<3x1x64xf32, #tpu.memory_space<vmem>>, %arg4: memref<9x64x64xbf16, #tpu.memory_space<vmem>>, %arg5: memref<9x1x64xf32, #tpu.memory_space<vmem>>, %arg6: memref<3x64x32xbf16, #tpu.memory_space<vmem>>, %arg7: memref<3x1x32xf32, #tpu.memory_space<vmem>>, %arg8: memref<3x64x16xbf16, #tpu.memory_space<vmem>>, %arg9: memref<3x1x16xf32, #tpu.memory_space<vmem>>, %arg10: memref<8x16xf32, #tpu.memory_space<vmem>>) attributes {dimension_semantics = [#tpu.dimension_semantics<parallel>], iteration_bounds = array<i64: 1>, scalar_prefetch = 0 : i64, scratch_operands = 0 : i64, tpu.core_type = #tpu.core_type<tc>, window_params = [{transform_indices = @transform_0, window_bounds = array<i64: 8, 32>}, {pipeline_mode = #tpu.pipeline_mode<synchronous>, transform_indices = @transform_1, window_bounds = array<i64: 3, 32, 64>}, {pipeline_mode = #tpu.pipeline_mode<synchronous>, transform_indices = @transform_2, window_bounds = array<i64: 3, 1, 64>}, {pipeline_mode = #tpu.pipeline_mode<synchronous>, transform_indices = @transform_3, window_bounds = array<i64: 9, 64, 64>}, {pipeline_mode = #tpu.pipeline_mode<synchronous>, transform_indices = @transform_4, window_bounds = array<i64: 9, 1, 64>}, {pipeline_mode = #tpu.pipeline_mode<synchronous>, transform_indices = @transform_5, window_bounds = array<i64: 3, 64, 32>}, {pipeline_mode = #tpu.pipeline_mode<synchronous>, transform_indices = @transform_6, window_bounds = array<i64: 3, 1, 32>}, {pipeline_mode = #tpu.pipeline_mode<synchronous>, transform_indices = @transform_7, window_bounds = array<i64: 3, 64, 16>}, {pipeline_mode = #tpu.pipeline_mode<synchronous>, transform_indices = @transform_8, window_bounds = array<i64: 3, 1, 16>}, {transform_indices = @transform_9, window_bounds = array<i64: 8, 16>}]} {
    %c0 = arith.constant 0 : index
    %c0_0 = arith.constant 0 : index
    %0 = vector.load %arg1[%c0, %c0_0] : memref<8x32xf32, #tpu.memory_space<vmem>>, vector<8x32xf32>
    %cst = arith.constant 0.000000e+00 : f32
    %1 = vector.broadcast %cst : f32 to vector<8x16xf32>
    %2 = arith.truncf %0 : vector<8x32xf32> to vector<8x32xbf16>
    %c0_1 = arith.constant 0 : index
    %c0_2 = arith.constant 0 : index
    %c0_3 = arith.constant 0 : index
    %3 = vector.load %arg2[%c0_1, %c0_2, %c0_3] : memref<3x32x64xbf16, #tpu.memory_space<vmem>>, vector<1x32x64xbf16>
    %4 = vector.shape_cast %3 : vector<1x32x64xbf16> to vector<32x64xbf16>
    %cst_4 = arith.constant dense<0.000000e+00> : vector<8x64xf32>
    %5 = tpu.matmul %2, %4, %cst_4 {dimension_numbers = #tpu.dot_dimension_numbers<[1], [0], [0], [1], [0, 0, 1, 1], [], []>} : vector<8x32xbf16>, vector<32x64xbf16>, vector<8x64xf32> -> vector<8x64xf32>
    %c0_5 = arith.constant 0 : index
    %c0_6 = arith.constant 0 : index
    %c0_7 = arith.constant 0 : index
    %6 = vector.load %arg3[%c0_5, %c0_6, %c0_7] : memref<3x1x64xf32, #tpu.memory_space<vmem>>, vector<1x1x64xf32>
    %7 = vector.shape_cast %6 : vector<1x1x64xf32> to vector<1x64xf32>
    %8 = vector.broadcast %7 : vector<1x64xf32> to vector<8x64xf32>
    %9 = arith.addf %5, %8 : vector<8x64xf32>
    %cst_8 = arith.constant 0.000000e+00 : f32
    %10 = vector.broadcast %cst_8 : f32 to vector<8x64xf32>
    %11 = arith.maximumf %9, %10 : vector<8x64xf32>
    %12 = arith.truncf %11 : vector<8x64xf32> to vector<8x64xbf16>
    %c0_9 = arith.constant 0 : index
    %c0_10 = arith.constant 0 : index
    %c0_11 = arith.constant 0 : index
    %13 = vector.load %arg4[%c0_9, %c0_10, %c0_11] : memref<9x64x64xbf16, #tpu.memory_space<vmem>>, vector<1x64x64xbf16>
    %14 = vector.shape_cast %13 : vector<1x64x64xbf16> to vector<64x64xbf16>
    %cst_12 = arith.constant dense<0.000000e+00> : vector<8x64xf32>
    %15 = tpu.matmul %12, %14, %cst_12 {dimension_numbers = #tpu.dot_dimension_numbers<[1], [0], [0], [1], [0, 0, 1, 1], [], []>} : vector<8x64xbf16>, vector<64x64xbf16>, vector<8x64xf32> -> vector<8x64xf32>
    %c0_13 = arith.constant 0 : index
    %c0_14 = arith.constant 0 : index
    %c0_15 = arith.constant 0 : index
    %16 = vector.load %arg5[%c0_13, %c0_14, %c0_15] : memref<9x1x64xf32, #tpu.memory_space<vmem>>, vector<1x1x64xf32>
    %17 = vector.shape_cast %16 : vector<1x1x64xf32> to vector<1x64xf32>
    %18 = vector.broadcast %17 : vector<1x64xf32> to vector<8x64xf32>
    %19 = arith.addf %15, %18 : vector<8x64xf32>
    %cst_16 = arith.constant 0.000000e+00 : f32
    %20 = vector.broadcast %cst_16 : f32 to vector<8x64xf32>
    %21 = arith.maximumf %19, %20 : vector<8x64xf32>
    %22 = arith.truncf %21 : vector<8x64xf32> to vector<8x64xbf16>
    %c1 = arith.constant 1 : index
    %c0_17 = arith.constant 0 : index
    %c0_18 = arith.constant 0 : index
    %23 = vector.load %arg4[%c1, %c0_17, %c0_18] : memref<9x64x64xbf16, #tpu.memory_space<vmem>>, vector<1x64x64xbf16>
    %24 = vector.shape_cast %23 : vector<1x64x64xbf16> to vector<64x64xbf16>
    %cst_19 = arith.constant dense<0.000000e+00> : vector<8x64xf32>
    %25 = tpu.matmul %22, %24, %cst_19 {dimension_numbers = #tpu.dot_dimension_numbers<[1], [0], [0], [1], [0, 0, 1, 1], [], []>} : vector<8x64xbf16>, vector<64x64xbf16>, vector<8x64xf32> -> vector<8x64xf32>
    %c1_20 = arith.constant 1 : index
    %c0_21 = arith.constant 0 : index
    %c0_22 = arith.constant 0 : index
    %26 = vector.load %arg5[%c1_20, %c0_21, %c0_22] : memref<9x1x64xf32, #tpu.memory_space<vmem>>, vector<1x1x64xf32>
    %27 = vector.shape_cast %26 : vector<1x1x64xf32> to vector<1x64xf32>
    %28 = vector.broadcast %27 : vector<1x64xf32> to vector<8x64xf32>
    %29 = arith.addf %25, %28 : vector<8x64xf32>
    %cst_23 = arith.constant 0.000000e+00 : f32
    %30 = vector.broadcast %cst_23 : f32 to vector<8x64xf32>
    %31 = arith.maximumf %29, %30 : vector<8x64xf32>
    %32 = arith.truncf %31 : vector<8x64xf32> to vector<8x64xbf16>
    %c2 = arith.constant 2 : index
    %c0_24 = arith.constant 0 : index
    %c0_25 = arith.constant 0 : index
    %33 = vector.load %arg4[%c2, %c0_24, %c0_25] : memref<9x64x64xbf16, #tpu.memory_space<vmem>>, vector<1x64x64xbf16>
    %34 = vector.shape_cast %33 : vector<1x64x64xbf16> to vector<64x64xbf16>
    %cst_26 = arith.constant dense<0.000000e+00> : vector<8x64xf32>
    %35 = tpu.matmul %32, %34, %cst_26 {dimension_numbers = #tpu.dot_dimension_numbers<[1], [0], [0], [1], [0, 0, 1, 1], [], []>} : vector<8x64xbf16>, vector<64x64xbf16>, vector<8x64xf32> -> vector<8x64xf32>
    %c2_27 = arith.constant 2 : index
    %c0_28 = arith.constant 0 : index
    %c0_29 = arith.constant 0 : index
    %36 = vector.load %arg5[%c2_27, %c0_28, %c0_29] : memref<9x1x64xf32, #tpu.memory_space<vmem>>, vector<1x1x64xf32>
    %37 = vector.shape_cast %36 : vector<1x1x64xf32> to vector<1x64xf32>
    %38 = vector.broadcast %37 : vector<1x64xf32> to vector<8x64xf32>
    %39 = arith.addf %35, %38 : vector<8x64xf32>
    %cst_30 = arith.constant 0.000000e+00 : f32
    %40 = vector.broadcast %cst_30 : f32 to vector<8x64xf32>
    %41 = arith.maximumf %39, %40 : vector<8x64xf32>
    %42 = arith.truncf %41 : vector<8x64xf32> to vector<8x64xbf16>
    %c0_31 = arith.constant 0 : index
    %c0_32 = arith.constant 0 : index
    %c0_33 = arith.constant 0 : index
    %43 = vector.load %arg6[%c0_31, %c0_32, %c0_33] : memref<3x64x32xbf16, #tpu.memory_space<vmem>>, vector<1x64x32xbf16>
    %44 = vector.shape_cast %43 : vector<1x64x32xbf16> to vector<64x32xbf16>
    %cst_34 = arith.constant dense<0.000000e+00> : vector<8x32xf32>
    %45 = tpu.matmul %42, %44, %cst_34 {dimension_numbers = #tpu.dot_dimension_numbers<[1], [0], [0], [1], [0, 0, 1, 1], [], []>} : vector<8x64xbf16>, vector<64x32xbf16>, vector<8x32xf32> -> vector<8x32xf32>
    %c0_35 = arith.constant 0 : index
    %c0_36 = arith.constant 0 : index
    %c0_37 = arith.constant 0 : index
    %46 = vector.load %arg7[%c0_35, %c0_36, %c0_37] : memref<3x1x32xf32, #tpu.memory_space<vmem>>, vector<1x1x32xf32>
    %47 = vector.shape_cast %46 : vector<1x1x32xf32> to vector<1x32xf32>
    %48 = vector.broadcast %47 : vector<1x32xf32> to vector<8x32xf32>
    %49 = arith.addf %45, %48 : vector<8x32xf32>
    %c0_38 = arith.constant 0 : index
    %c0_39 = arith.constant 0 : index
    %c0_40 = arith.constant 0 : index
    %50 = vector.load %arg8[%c0_38, %c0_39, %c0_40] : memref<3x64x16xbf16, #tpu.memory_space<vmem>>, vector<1x64x16xbf16>
    %51 = vector.shape_cast %50 : vector<1x64x16xbf16> to vector<64x16xbf16>
    %cst_41 = arith.constant dense<0.000000e+00> : vector<8x16xf32>
    %52 = tpu.matmul %42, %51, %cst_41 {dimension_numbers = #tpu.dot_dimension_numbers<[1], [0], [0], [1], [0, 0, 1, 1], [], []>} : vector<8x64xbf16>, vector<64x16xbf16>, vector<8x16xf32> -> vector<8x16xf32>
    %c0_42 = arith.constant 0 : index
    %c0_43 = arith.constant 0 : index
    %c0_44 = arith.constant 0 : index
    %53 = vector.load %arg9[%c0_42, %c0_43, %c0_44] : memref<3x1x16xf32, #tpu.memory_space<vmem>>, vector<1x1x16xf32>
    %54 = vector.shape_cast %53 : vector<1x1x16xf32> to vector<1x16xf32>
    %55 = vector.broadcast %54 : vector<1x16xf32> to vector<8x16xf32>
    %56 = arith.addf %52, %55 : vector<8x16xf32>
    %57 = arith.subf %0, %49 : vector<8x32xf32>
    %58 = arith.addf %1, %56 : vector<8x16xf32>
    %59 = arith.truncf %57 : vector<8x32xf32> to vector<8x32xbf16>
    %c1_45 = arith.constant 1 : index
    %c0_46 = arith.constant 0 : index
    %c0_47 = arith.constant 0 : index
    %60 = vector.load %arg2[%c1_45, %c0_46, %c0_47] : memref<3x32x64xbf16, #tpu.memory_space<vmem>>, vector<1x32x64xbf16>
    %61 = vector.shape_cast %60 : vector<1x32x64xbf16> to vector<32x64xbf16>
    %cst_48 = arith.constant dense<0.000000e+00> : vector<8x64xf32>
    %62 = tpu.matmul %59, %61, %cst_48 {dimension_numbers = #tpu.dot_dimension_numbers<[1], [0], [0], [1], [0, 0, 1, 1], [], []>} : vector<8x32xbf16>, vector<32x64xbf16>, vector<8x64xf32> -> vector<8x64xf32>
    %c1_49 = arith.constant 1 : index
    %c0_50 = arith.constant 0 : index
    %c0_51 = arith.constant 0 : index
    %63 = vector.load %arg3[%c1_49, %c0_50, %c0_51] : memref<3x1x64xf32, #tpu.memory_space<vmem>>, vector<1x1x64xf32>
    %64 = vector.shape_cast %63 : vector<1x1x64xf32> to vector<1x64xf32>
    %65 = vector.broadcast %64 : vector<1x64xf32> to vector<8x64xf32>
    %66 = arith.addf %62, %65 : vector<8x64xf32>
    %cst_52 = arith.constant 0.000000e+00 : f32
    %67 = vector.broadcast %cst_52 : f32 to vector<8x64xf32>
    %68 = arith.maximumf %66, %67 : vector<8x64xf32>
    %69 = arith.truncf %68 : vector<8x64xf32> to vector<8x64xbf16>
    %c3 = arith.constant 3 : index
    %c0_53 = arith.constant 0 : index
    %c0_54 = arith.constant 0 : index
    %70 = vector.load %arg4[%c3, %c0_53, %c0_54] : memref<9x64x64xbf16, #tpu.memory_space<vmem>>, vector<1x64x64xbf16>
    %71 = vector.shape_cast %70 : vector<1x64x64xbf16> to vector<64x64xbf16>
    %cst_55 = arith.constant dense<0.000000e+00> : vector<8x64xf32>
    %72 = tpu.matmul %69, %71, %cst_55 {dimension_numbers = #tpu.dot_dimension_numbers<[1], [0], [0], [1], [0, 0, 1, 1], [], []>} : vector<8x64xbf16>, vector<64x64xbf16>, vector<8x64xf32> -> vector<8x64xf32>
    %c3_56 = arith.constant 3 : index
    %c0_57 = arith.constant 0 : index
    %c0_58 = arith.constant 0 : index
    %73 = vector.load %arg5[%c3_56, %c0_57, %c0_58] : memref<9x1x64xf32, #tpu.memory_space<vmem>>, vector<1x1x64xf32>
    %74 = vector.shape_cast %73 : vector<1x1x64xf32> to vector<1x64xf32>
    %75 = vector.broadcast %74 : vector<1x64xf32> to vector<8x64xf32>
    %76 = arith.addf %72, %75 : vector<8x64xf32>
    %cst_59 = arith.constant 0.000000e+00 : f32
    %77 = vector.broadcast %cst_59 : f32 to vector<8x64xf32>
    %78 = arith.maximumf %76, %77 : vector<8x64xf32>
    %79 = arith.truncf %78 : vector<8x64xf32> to vector<8x64xbf16>
    %c4 = arith.constant 4 : index
    %c0_60 = arith.constant 0 : index
    %c0_61 = arith.constant 0 : index
    %80 = vector.load %arg4[%c4, %c0_60, %c0_61] : memref<9x64x64xbf16, #tpu.memory_space<vmem>>, vector<1x64x64xbf16>
    %81 = vector.shape_cast %80 : vector<1x64x64xbf16> to vector<64x64xbf16>
    %cst_62 = arith.constant dense<0.000000e+00> : vector<8x64xf32>
    %82 = tpu.matmul %79, %81, %cst_62 {dimension_numbers = #tpu.dot_dimension_numbers<[1], [0], [0], [1], [0, 0, 1, 1], [], []>} : vector<8x64xbf16>, vector<64x64xbf16>, vector<8x64xf32> -> vector<8x64xf32>
    %c4_63 = arith.constant 4 : index
    %c0_64 = arith.constant 0 : index
    %c0_65 = arith.constant 0 : index
    %83 = vector.load %arg5[%c4_63, %c0_64, %c0_65] : memref<9x1x64xf32, #tpu.memory_space<vmem>>, vector<1x1x64xf32>
    %84 = vector.shape_cast %83 : vector<1x1x64xf32> to vector<1x64xf32>
    %85 = vector.broadcast %84 : vector<1x64xf32> to vector<8x64xf32>
    %86 = arith.addf %82, %85 : vector<8x64xf32>
    %cst_66 = arith.constant 0.000000e+00 : f32
    %87 = vector.broadcast %cst_66 : f32 to vector<8x64xf32>
    %88 = arith.maximumf %86, %87 : vector<8x64xf32>
    %89 = arith.truncf %88 : vector<8x64xf32> to vector<8x64xbf16>
    %c5 = arith.constant 5 : index
    %c0_67 = arith.constant 0 : index
    %c0_68 = arith.constant 0 : index
    %90 = vector.load %arg4[%c5, %c0_67, %c0_68] : memref<9x64x64xbf16, #tpu.memory_space<vmem>>, vector<1x64x64xbf16>
    %91 = vector.shape_cast %90 : vector<1x64x64xbf16> to vector<64x64xbf16>
    %cst_69 = arith.constant dense<0.000000e+00> : vector<8x64xf32>
    %92 = tpu.matmul %89, %91, %cst_69 {dimension_numbers = #tpu.dot_dimension_numbers<[1], [0], [0], [1], [0, 0, 1, 1], [], []>} : vector<8x64xbf16>, vector<64x64xbf16>, vector<8x64xf32> -> vector<8x64xf32>
    %c5_70 = arith.constant 5 : index
    %c0_71 = arith.constant 0 : index
    %c0_72 = arith.constant 0 : index
    %93 = vector.load %arg5[%c5_70, %c0_71, %c0_72] : memref<9x1x64xf32, #tpu.memory_space<vmem>>, vector<1x1x64xf32>
    %94 = vector.shape_cast %93 : vector<1x1x64xf32> to vector<1x64xf32>
    %95 = vector.broadcast %94 : vector<1x64xf32> to vector<8x64xf32>
    %96 = arith.addf %92, %95 : vector<8x64xf32>
    %cst_73 = arith.constant 0.000000e+00 : f32
    %97 = vector.broadcast %cst_73 : f32 to vector<8x64xf32>
    %98 = arith.maximumf %96, %97 : vector<8x64xf32>
    %99 = arith.truncf %98 : vector<8x64xf32> to vector<8x64xbf16>
    %c1_74 = arith.constant 1 : index
    %c0_75 = arith.constant 0 : index
    %c0_76 = arith.constant 0 : index
    %100 = vector.load %arg6[%c1_74, %c0_75, %c0_76] : memref<3x64x32xbf16, #tpu.memory_space<vmem>>, vector<1x64x32xbf16>
    %101 = vector.shape_cast %100 : vector<1x64x32xbf16> to vector<64x32xbf16>
    %cst_77 = arith.constant dense<0.000000e+00> : vector<8x32xf32>
    %102 = tpu.matmul %99, %101, %cst_77 {dimension_numbers = #tpu.dot_dimension_numbers<[1], [0], [0], [1], [0, 0, 1, 1], [], []>} : vector<8x64xbf16>, vector<64x32xbf16>, vector<8x32xf32> -> vector<8x32xf32>
    %c1_78 = arith.constant 1 : index
    %c0_79 = arith.constant 0 : index
    %c0_80 = arith.constant 0 : index
    %103 = vector.load %arg7[%c1_78, %c0_79, %c0_80] : memref<3x1x32xf32, #tpu.memory_space<vmem>>, vector<1x1x32xf32>
    %104 = vector.shape_cast %103 : vector<1x1x32xf32> to vector<1x32xf32>
    %105 = vector.broadcast %104 : vector<1x32xf32> to vector<8x32xf32>
    %106 = arith.addf %102, %105 : vector<8x32xf32>
    %c1_81 = arith.constant 1 : index
    %c0_82 = arith.constant 0 : index
    %c0_83 = arith.constant 0 : index
    %107 = vector.load %arg8[%c1_81, %c0_82, %c0_83] : memref<3x64x16xbf16, #tpu.memory_space<vmem>>, vector<1x64x16xbf16>
    %108 = vector.shape_cast %107 : vector<1x64x16xbf16> to vector<64x16xbf16>
    %cst_84 = arith.constant dense<0.000000e+00> : vector<8x16xf32>
    %109 = tpu.matmul %99, %108, %cst_84 {dimension_numbers = #tpu.dot_dimension_numbers<[1], [0], [0], [1], [0, 0, 1, 1], [], []>} : vector<8x64xbf16>, vector<64x16xbf16>, vector<8x16xf32> -> vector<8x16xf32>
    %c1_85 = arith.constant 1 : index
    %c0_86 = arith.constant 0 : index
    %c0_87 = arith.constant 0 : index
    %110 = vector.load %arg9[%c1_85, %c0_86, %c0_87] : memref<3x1x16xf32, #tpu.memory_space<vmem>>, vector<1x1x16xf32>
    %111 = vector.shape_cast %110 : vector<1x1x16xf32> to vector<1x16xf32>
    %112 = vector.broadcast %111 : vector<1x16xf32> to vector<8x16xf32>
    %113 = arith.addf %109, %112 : vector<8x16xf32>
    %114 = arith.subf %57, %106 : vector<8x32xf32>
    %115 = arith.addf %58, %113 : vector<8x16xf32>
    %116 = arith.truncf %114 : vector<8x32xf32> to vector<8x32xbf16>
    %c2_88 = arith.constant 2 : index
    %c0_89 = arith.constant 0 : index
    %c0_90 = arith.constant 0 : index
    %117 = vector.load %arg2[%c2_88, %c0_89, %c0_90] : memref<3x32x64xbf16, #tpu.memory_space<vmem>>, vector<1x32x64xbf16>
    %118 = vector.shape_cast %117 : vector<1x32x64xbf16> to vector<32x64xbf16>
    %cst_91 = arith.constant dense<0.000000e+00> : vector<8x64xf32>
    %119 = tpu.matmul %116, %118, %cst_91 {dimension_numbers = #tpu.dot_dimension_numbers<[1], [0], [0], [1], [0, 0, 1, 1], [], []>} : vector<8x32xbf16>, vector<32x64xbf16>, vector<8x64xf32> -> vector<8x64xf32>
    %c2_92 = arith.constant 2 : index
    %c0_93 = arith.constant 0 : index
    %c0_94 = arith.constant 0 : index
    %120 = vector.load %arg3[%c2_92, %c0_93, %c0_94] : memref<3x1x64xf32, #tpu.memory_space<vmem>>, vector<1x1x64xf32>
    %121 = vector.shape_cast %120 : vector<1x1x64xf32> to vector<1x64xf32>
    %122 = vector.broadcast %121 : vector<1x64xf32> to vector<8x64xf32>
    %123 = arith.addf %119, %122 : vector<8x64xf32>
    %cst_95 = arith.constant 0.000000e+00 : f32
    %124 = vector.broadcast %cst_95 : f32 to vector<8x64xf32>
    %125 = arith.maximumf %123, %124 : vector<8x64xf32>
    %126 = arith.truncf %125 : vector<8x64xf32> to vector<8x64xbf16>
    %c6 = arith.constant 6 : index
    %c0_96 = arith.constant 0 : index
    %c0_97 = arith.constant 0 : index
    %127 = vector.load %arg4[%c6, %c0_96, %c0_97] : memref<9x64x64xbf16, #tpu.memory_space<vmem>>, vector<1x64x64xbf16>
    %128 = vector.shape_cast %127 : vector<1x64x64xbf16> to vector<64x64xbf16>
    %cst_98 = arith.constant dense<0.000000e+00> : vector<8x64xf32>
    %129 = tpu.matmul %126, %128, %cst_98 {dimension_numbers = #tpu.dot_dimension_numbers<[1], [0], [0], [1], [0, 0, 1, 1], [], []>} : vector<8x64xbf16>, vector<64x64xbf16>, vector<8x64xf32> -> vector<8x64xf32>
    %c6_99 = arith.constant 6 : index
    %c0_100 = arith.constant 0 : index
    %c0_101 = arith.constant 0 : index
    %130 = vector.load %arg5[%c6_99, %c0_100, %c0_101] : memref<9x1x64xf32, #tpu.memory_space<vmem>>, vector<1x1x64xf32>
    %131 = vector.shape_cast %130 : vector<1x1x64xf32> to vector<1x64xf32>
    %132 = vector.broadcast %131 : vector<1x64xf32> to vector<8x64xf32>
    %133 = arith.addf %129, %132 : vector<8x64xf32>
    %cst_102 = arith.constant 0.000000e+00 : f32
    %134 = vector.broadcast %cst_102 : f32 to vector<8x64xf32>
    %135 = arith.maximumf %133, %134 : vector<8x64xf32>
    %136 = arith.truncf %135 : vector<8x64xf32> to vector<8x64xbf16>
    %c7 = arith.constant 7 : index
    %c0_103 = arith.constant 0 : index
    %c0_104 = arith.constant 0 : index
    %137 = vector.load %arg4[%c7, %c0_103, %c0_104] : memref<9x64x64xbf16, #tpu.memory_space<vmem>>, vector<1x64x64xbf16>
    %138 = vector.shape_cast %137 : vector<1x64x64xbf16> to vector<64x64xbf16>
    %cst_105 = arith.constant dense<0.000000e+00> : vector<8x64xf32>
    %139 = tpu.matmul %136, %138, %cst_105 {dimension_numbers = #tpu.dot_dimension_numbers<[1], [0], [0], [1], [0, 0, 1, 1], [], []>} : vector<8x64xbf16>, vector<64x64xbf16>, vector<8x64xf32> -> vector<8x64xf32>
    %c7_106 = arith.constant 7 : index
    %c0_107 = arith.constant 0 : index
    %c0_108 = arith.constant 0 : index
    %140 = vector.load %arg5[%c7_106, %c0_107, %c0_108] : memref<9x1x64xf32, #tpu.memory_space<vmem>>, vector<1x1x64xf32>
    %141 = vector.shape_cast %140 : vector<1x1x64xf32> to vector<1x64xf32>
    %142 = vector.broadcast %141 : vector<1x64xf32> to vector<8x64xf32>
    %143 = arith.addf %139, %142 : vector<8x64xf32>
    %cst_109 = arith.constant 0.000000e+00 : f32
    %144 = vector.broadcast %cst_109 : f32 to vector<8x64xf32>
    %145 = arith.maximumf %143, %144 : vector<8x64xf32>
    %146 = arith.truncf %145 : vector<8x64xf32> to vector<8x64xbf16>
    %c8 = arith.constant 8 : index
    %c0_110 = arith.constant 0 : index
    %c0_111 = arith.constant 0 : index
    %147 = vector.load %arg4[%c8, %c0_110, %c0_111] : memref<9x64x64xbf16, #tpu.memory_space<vmem>>, vector<1x64x64xbf16>
    %148 = vector.shape_cast %147 : vector<1x64x64xbf16> to vector<64x64xbf16>
    %cst_112 = arith.constant dense<0.000000e+00> : vector<8x64xf32>
    %149 = tpu.matmul %146, %148, %cst_112 {dimension_numbers = #tpu.dot_dimension_numbers<[1], [0], [0], [1], [0, 0, 1, 1], [], []>} : vector<8x64xbf16>, vector<64x64xbf16>, vector<8x64xf32> -> vector<8x64xf32>
    %c8_113 = arith.constant 8 : index
    %c0_114 = arith.constant 0 : index
    %c0_115 = arith.constant 0 : index
    %150 = vector.load %arg5[%c8_113, %c0_114, %c0_115] : memref<9x1x64xf32, #tpu.memory_space<vmem>>, vector<1x1x64xf32>
    %151 = vector.shape_cast %150 : vector<1x1x64xf32> to vector<1x64xf32>
    %152 = vector.broadcast %151 : vector<1x64xf32> to vector<8x64xf32>
    %153 = arith.addf %149, %152 : vector<8x64xf32>
    %cst_116 = arith.constant 0.000000e+00 : f32
    %154 = vector.broadcast %cst_116 : f32 to vector<8x64xf32>
    %155 = arith.maximumf %153, %154 : vector<8x64xf32>
    %156 = arith.truncf %155 : vector<8x64xf32> to vector<8x64xbf16>
    %c2_117 = arith.constant 2 : index
    %c0_118 = arith.constant 0 : index
    %c0_119 = arith.constant 0 : index
    %157 = vector.load %arg8[%c2_117, %c0_118, %c0_119] : memref<3x64x16xbf16, #tpu.memory_space<vmem>>, vector<1x64x16xbf16>
    %158 = vector.shape_cast %157 : vector<1x64x16xbf16> to vector<64x16xbf16>
    %cst_120 = arith.constant dense<0.000000e+00> : vector<8x16xf32>
    %159 = tpu.matmul %156, %158, %cst_120 {dimension_numbers = #tpu.dot_dimension_numbers<[1], [0], [0], [1], [0, 0, 1, 1], [], []>} : vector<8x64xbf16>, vector<64x16xbf16>, vector<8x16xf32> -> vector<8x16xf32>
    %c2_121 = arith.constant 2 : index
    %c0_122 = arith.constant 0 : index
    %c0_123 = arith.constant 0 : index
    %160 = vector.load %arg9[%c2_121, %c0_122, %c0_123] : memref<3x1x16xf32, #tpu.memory_space<vmem>>, vector<1x1x16xf32>
    %161 = vector.shape_cast %160 : vector<1x1x16xf32> to vector<1x16xf32>
    %162 = vector.broadcast %161 : vector<1x16xf32> to vector<8x16xf32>
    %163 = arith.addf %159, %162 : vector<8x16xf32>
    %164 = arith.addf %115, %163 : vector<8x16xf32>
    %c0_124 = arith.constant 0 : index
    %c0_125 = arith.constant 0 : index
    %165 = vector.load %arg10[%c0_124, %c0_125] : memref<8x16xf32, #tpu.memory_space<vmem>>, vector<8x16xf32>
    tpu.vector_store %arg10[%c0_124, %c0_125], %164 {strides = array<i32>} : memref<8x16xf32, #tpu.memory_space<vmem>>, vector<8x16xf32>,
    return
  }
  func.func @transform_0(%arg0: i32) -> (i32, i32) {
    %c0_i32 = arith.constant 0 : i32
    %c0_i32_0 = arith.constant 0 : i32
    return %arg0, %c0_i32 : i32, i32
  }
  func.func @transform_1(%arg0: i32) -> (i32, i32, i32) {
    %c0_i32 = arith.constant 0 : i32
    %c0_i32_0 = arith.constant 0 : i32
    %c0_i32_1 = arith.constant 0 : i32
    %c0_i32_2 = arith.constant 0 : i32
    return %c0_i32, %c0_i32_0, %c0_i32_1 : i32, i32, i32
  }
  func.func @transform_2(%arg0: i32) -> (i32, i32, i32) {
    %c0_i32 = arith.constant 0 : i32
    %c0_i32_0 = arith.constant 0 : i32
    %c0_i32_1 = arith.constant 0 : i32
    %c0_i32_2 = arith.constant 0 : i32
    return %c0_i32, %c0_i32_0, %c0_i32_1 : i32, i32, i32
  }
  func.func @transform_3(%arg0: i32) -> (i32, i32, i32) {
    %c0_i32 = arith.constant 0 : i32
    %c0_i32_0 = arith.constant 0 : i32
    %c0_i32_1 = arith.constant 0 : i32
    %c0_i32_2 = arith.constant 0 : i32
    return %c0_i32, %c0_i32_0, %c0_i32_1 : i32, i32, i32
  }
  func.func @transform_4(%arg0: i32) -> (i32, i32, i32) {
    %c0_i32 = arith.constant 0 : i32
    %c0_i32_0 = arith.constant 0 : i32
    %c0_i32_1 = arith.constant 0 : i32
    %c0_i32_2 = arith.constant 0 : i32
    return %c0_i32, %c0_i32_0, %c0_i32_1 : i32, i32, i32
  }
  func.func @transform_5(%arg0: i32) -> (i32, i32, i32) {
    %c0_i32 = arith.constant 0 : i32
    %c0_i32_0 = arith.constant 0 : i32
    %c0_i32_1 = arith.constant 0 : i32
    %c0_i32_2 = arith.constant 0 : i32
    return %c0_i32, %c0_i32_0, %c0_i32_1 : i32, i32, i32
  }
  func.func @transform_6(%arg0: i32) -> (i32, i32, i32) {
    %c0_i32 = arith.constant 0 : i32
    %c0_i32_0 = arith.constant 0 : i32
    %c0_i32_1 = arith.constant 0 : i32
    %c0_i32_2 = arith.constant 0 : i32
    return %c0_i32, %c0_i32_0, %c0_i32_1 : i32, i32, i32
  }
  func.func @transform_7(%arg0: i32) -> (i32, i32, i32) {
    %c0_i32 = arith.constant 0 : i32
    %c0_i32_0 = arith.constant 0 : i32
    %c0_i32_1 = arith.constant 0 : i32
    %c0_i32_2 = arith.constant 0 : i32
    return %c0_i32, %c0_i32_0, %c0_i32_1 : i32, i32, i32
  }
  func.func @transform_8(%arg0: i32) -> (i32, i32, i32) {
    %c0_i32 = arith.constant 0 : i32
    %c0_i32_0 = arith.constant 0 : i32
    %c0_i32_1 = arith.constant 0 : i32
    %c0_i32_2 = arith.constant 0 : i32
    return %c0_i32, %c0_i32_0, %c0_i32_1 : i32, i32, i32
  }
  func.func @transform_9(%arg0: i32) -> (i32, i32) {
    %c0_i32 = arith.constant 0 : i32
    %c0_i32_0 = arith.constant 0 : i32
    return %arg0, %c0_i32 : i32, i32
  }
}

</mosaic_0001>

<llo_original>
// kernel: tpu_custom_call.1
$region0: #{tpu_custom_call.1}
  #allocation0 [shape = 'u32[]', space=smem, size = 0x4, offset = 0x4, fixed_abs, tag = 'smem constant byte address 0x4 - core index']
  #allocation1 [shape = 'u32[72,128]{1,0:T(1,128)}', space=vmem, size = 0x9000, scoped, tag = 'internal scratch']
  %s0 = inlined_call_operand.vmem [shape: f32[8,32], index: 0, kind: input, shape index: {}]
  %s1 = inlined_call_operand.vmem [shape: bf16[3,32,64], index: 1, kind: input, shape index: {}]
  %s2 = inlined_call_operand.vmem [shape: f32[3,1,64], index: 2, kind: input, shape index: {}]
  %s3 = inlined_call_operand.hbm [shape: bf16[9,64,64], index: 3, kind: input, shape index: {}]
  %s4 = inlined_call_operand.vmem [shape: f32[9,1,64], index: 4, kind: input, shape index: {}]
  %s5 = inlined_call_operand.vmem [shape: bf16[3,64,32], index: 5, kind: input, shape index: {}]
  %s6 = inlined_call_operand.vmem [shape: f32[3,1,32], index: 6, kind: input, shape index: {}]
  %s7 = inlined_call_operand.vmem [shape: bf16[3,64,16], index: 7, kind: input, shape index: {}]
  %s8 = inlined_call_operand.vmem [shape: f32[3,1,16], index: 8, kind: input, shape index: {}]
  %s9 = inlined_call_operand.hbm [shape: f32[8,16], index: 9, kind: output, shape index: {}]
  %s10 = sld [smem:[#allocation0]]
  $region50: #{tpu_custom_call.1} parent=0
    _
  %s12 = ssub.s32 1, %s10
  %s13 = scalar_select 0, %s12, %s10
  $region1: #{tpu_custom_call.1} parent=0
    #allocation2 [shape = 'u8[147456]{0}', space=vmem, size = 0x24000, scoped, tag = 'input window, operand 3, single buffered']
    #allocation3 [shape = 's32[1]{0}', space=sflag, size = 0x4, scoped, tag = 'scoped memory for tpu_custom_call.1']
    #allocation4 [shape = 's32[1]{0}', space=sflag, size = 0x4, scoped, tag = 'scoped memory for tpu_custom_call.1']
    #allocation5 [shape = 'u8[4096]{0}', space=vmem, size = 0x1000, scoped, tag = 'output window, operand 0, single buffered']
    %14 = vsyncpa [#allocation3], 0
    %15 = vsyncpa [#allocation4], 0
    // Predicated region
    $region2: #{tpu_custom_call.1} parent=1 // pred_check
      _
    $region3: #{tpu_custom_call.1} parent=1 // pred_check_branch
      %17 = sbr.rel (0) target = $region5
    $region4: #{tpu_custom_call.1} parent=1 // pred_region
      _
    $region5: #{tpu_custom_call.1} parent=1 // pred_fallthru
      _
    // Predicated region
    $region6: #{tpu_custom_call.1} parent=1 // pred_check
      _
    $region7: #{tpu_custom_call.1} parent=1 // pred_check_branch
      %19 = sbr.rel (0) target = $region9
    $region8: #{tpu_custom_call.1} parent=1 // pred_region
      _
    $region9: #{tpu_custom_call.1} parent=1 // pred_fallthru
      _
    // Predicated region
    $region10: #{tpu_custom_call.1} parent=1 // pred_check
      _
    $region11: #{tpu_custom_call.1} parent=1 // pred_check_branch
      %21 = sbr.rel (0) target = $region13
    $region12: #{tpu_custom_call.1} parent=1 // pred_region
      _
    $region13: #{tpu_custom_call.1} parent=1 // pred_fallthru
      _
    // Predicated region
    $region14: #{tpu_custom_call.1} parent=1 // pred_check
      _
    $region15: #{tpu_custom_call.1} parent=1 // pred_check_branch
      %23 = sbr.rel (0) target = $region17
    $region16: #{tpu_custom_call.1} parent=1 // pred_region
      %25 = vsyncadd [#allocation3], 0
      %s26 = sshll.u32 %s3, 4
      %s27 = int_to_ptr.hbm [resolvable:$true] %s26
      %s28 = sshll.u32 [#allocation2], 4
      %s29 = int_to_ptr.vmem [resolvable:$true] %s28
      %34 = dma.hbm_to_vmem [thread:$0]  %s27, 4608, %s29, [#allocation3], 64, 64, 4
    $region17: #{tpu_custom_call.1} parent=1 // pred_fallthru
      _
    // Predicated region
    $region18: #{tpu_custom_call.1} parent=1 // pred_check
      _
    $region19: #{tpu_custom_call.1} parent=1 // pred_check_branch
      %36 = sbr.rel (0) target = $region21
    $region20: #{tpu_custom_call.1} parent=1 // pred_region
      _
    $region21: #{tpu_custom_call.1} parent=1 // pred_fallthru
      _
    // Predicated region
    $region22: #{tpu_custom_call.1} parent=1 // pred_check
      _
    $region23: #{tpu_custom_call.1} parent=1 // pred_check_branch
      %38 = sbr.rel (0) target = $region25
    $region24: #{tpu_custom_call.1} parent=1 // pred_region
      _
    $region25: #{tpu_custom_call.1} parent=1 // pred_fallthru
      _
    // Predicated region
    $region26: #{tpu_custom_call.1} parent=1 // pred_check
      _
    $region27: #{tpu_custom_call.1} parent=1 // pred_check_branch
      %40 = sbr.rel (0) target = $region29
    $region28: #{tpu_custom_call.1} parent=1 // pred_region
      _
    $region29: #{tpu_custom_call.1} parent=1 // pred_fallthru
      _
    // Predicated region
    $region30: #{tpu_custom_call.1} parent=1 // pred_check
      _
    $region31: #{tpu_custom_call.1} parent=1 // pred_check_branch
      %42 = sbr.rel (0) target = $region33
    $region32: #{tpu_custom_call.1} parent=1 // pred_region
      _
    $region33: #{tpu_custom_call.1} parent=1 // pred_fallthru
      _
    // Predicated region
    $region34: #{tpu_custom_call.1} parent=1 // pred_check
      _
    $region35: #{tpu_custom_call.1} parent=1 // pred_check_branch
      %44 = sbr.rel (0) target = $region37
    $region36: #{tpu_custom_call.1} parent=1 // pred_region
      _
    $region37: #{tpu_custom_call.1} parent=1 // pred_fallthru
      _
    // Predicated region
    $region38: #{tpu_custom_call.1} parent=1 // pred_check
      _
    $region39: #{tpu_custom_call.1} parent=1 // pred_check_branch
      %46 = sbr.rel (0) target = $region41
    $region40: #{tpu_custom_call.1} parent=1 // pred_region
      %48 = dma.done [#allocation3], 4608
    $region41: #{tpu_custom_call.1} parent=1 // pred_fallthru
      _
    %v50 = vld [vmem:[%s0] sm:$0xff]
    %v51 = vpack.c.bf16 %v50, %v50
    %v52 = vld [vmem:[%s1] sm:$0xf]
    %v53 = vld [vmem:[%s1 + $0x4] sm:$0xf]
    %v54 = vld [vmem:[%s1 + $0x8] sm:$0xf]
    %v55 = vld [vmem:[%s1 + $0xc] sm:$0xf]
    %v56 = vld [vmem:[%s2] sm:$0x1]
    %v58 = vperm.slane %v56, 0
    %v64 = vunpack.c.l.b16 %v52
    %v65 = vunpack.c.l.b16 %v53
    %v66 = vunpack.c.l.b16 %v54
    %v67 = vunpack.c.l.b16 %v55
    %v68 = vpack.c.b16 %v65, %v64
    %v69 = vpack.c.b16 %v67, %v66
    %vm72 = vcmask 261120
    %v74 = vsel %vm72, %v51, 0
    %76 = vmatpush.bf16.msra.mxu0 0
    %77 = vmatpush.bf16.msra.mxu0 0
    %78 = vmatpush.bf16.msra.mxu0 0
    %79 = vmatpush.bf16.msra.mxu0 0
    %80 = vmatpush.bf16.msra.mxu0 0
    %81 = vmatpush.bf16.msra.mxu0 0
    %82 = vmatpush.bf16.msra.mxu0 %v69
    %83 = vmatpush.bf16.msra.mxu0 %v68
    %84 = vmatmul.bf16.gmra.mxu0 %v74
    %v85 = vpop.f32.mrf.mxu0
    %v86 = vadd.f32 %v58, %v85
    %v87 = vpop.f32.mrf.mxu0
    %88 = vdwg.mxu0
    %v89 = vmax.f32 %v86, 0.0
    %v90 = vpack.c.bf16 %v89, %v89
    %v91 = vld [vmem:[#allocation2] sm:$0xf]
    %v92 = vld [vmem:[#allocation2 + $0x4] sm:$0xf]
    %v93 = vld [vmem:[#allocation2 + $0x8] sm:$0xf]
    %v94 = vld [vmem:[#allocation2 + $0xc] sm:$0xf]
    %v95 = vld [vmem:[#allocation2 + $0x10] sm:$0xf]
    %v96 = vld [vmem:[#allocation2 + $0x14] sm:$0xf]
    %v97 = vld [vmem:[#allocation2 + $0x18] sm:$0xf]
    %v98 = vld [vmem:[#allocation2 + $0x1c] sm:$0xf]
    %v99 = vld [vmem:[%s4] sm:$0x1]
    %v101 = vperm.slane %v99, 0
    %v111 = vunpack.c.l.b16 %v91
    %v112 = vunpack.c.l.b16 %v92
    %v113 = vunpack.c.l.b16 %v93
    %v114 = vunpack.c.l.b16 %v94
    %v115 = vunpack.c.l.b16 %v95
    %v116 = vunpack.c.l.b16 %v96
    %v117 = vunpack.c.l.b16 %v97
    %v118 = vunpack.c.l.b16 %v98
    %v119 = vpack.c.b16 %v112, %v111
    %v120 = vpack.c.b16 %v114, %v113
    %v121 = vpack.c.b16 %v116, %v115
    %v122 = vpack.c.b16 %v118, %v117
    %vm127 = vcmask 523264
    %v129 = vsel %vm127, %v90, 0
    %131 = vmatpush.bf16.msra.mxu0 0
    %132 = vmatpush.bf16.msra.mxu0 0
    %133 = vmatpush.bf16.msra.mxu0 0
    %134 = vmatpush.bf16.msra.mxu0 0
    %135 = vmatpush.bf16.msra.mxu0 %v122
    %136 = vmatpush.bf16.msra.mxu0 %v121
    %137 = vmatpush.bf16.msra.mxu0 %v120
    %138 = vmatpush.bf16.msra.mxu0 %v119
    %139 = vmatmul.bf16.gmra.mxu0 %v129
    %v140 = vpop.f32.mrf.mxu0
    %v141 = vadd.f32 %v101, %v140
    %v142 = vpop.f32.mrf.mxu0
    %143 = vdwg.mxu0
    %v144 = vmax.f32 %v141, 0.0
    %v145 = vpack.c.bf16 %v144, %v144
    %s146 = scalar_lea.vmem [#allocation2], 32
    %v147 = vld [vmem:[%s146] sm:$0xf]
    %v148 = vld [vmem:[%s146 + $0x4] sm:$0xf]
    %v149 = vld [vmem:[%s146 + $0x8] sm:$0xf]
    %v150 = vld [vmem:[%s146 + $0xc] sm:$0xf]
    %v151 = vld [vmem:[%s146 + $0x10] sm:$0xf]
    %v152 = vld [vmem:[%s146 + $0x14] sm:$0xf]
    %v153 = vld [vmem:[%s146 + $0x18] sm:$0xf]
    %v154 = vld [vmem:[%s146 + $0x1c] sm:$0xf]
    %s155 = scalar_lea.vmem %s4, 1
    %v156 = vld [vmem:[%s155] sm:$0x1]
    %v158 = vperm.slane %v156, 0
    %v168 = vunpack.c.l.b16 %v147
    %v169 = vunpack.c.l.b16 %v148
    %v170 = vunpack.c.l.b16 %v149
    %v171 = vunpack.c.l.b16 %v150
    %v172 = vunpack.c.l.b16 %v151
    %v173 = vunpack.c.l.b16 %v152
    %v174 = vunpack.c.l.b16 %v153
    %v175 = vunpack.c.l.b16 %v154
    %v176 = vpack.c.b16 %v169, %v168
    %v177 = vpack.c.b16 %v171, %v170
    %v178 = vpack.c.b16 %v173, %v172
    %v179 = vpack.c.b16 %v175, %v174
    %v185 = vsel %vm127, %v145, 0
    %187 = vmatpush.bf16.msra.mxu0 0
    %188 = vmatpush.bf16.msra.mxu0 0
    %189 = vmatpush.bf16.msra.mxu0 0
    %190 = vmatpush.bf16.msra.mxu0 0
    %191 = vmatpush.bf16.msra.mxu0 %v179
    %192 = vmatpush.bf16.msra.mxu0 %v178
    %193 = vmatpush.bf16.msra.mxu0 %v177
    %194 = vmatpush.bf16.msra.mxu0 %v176
    %195 = vmatmul.bf16.gmra.mxu0 %v185
    %v196 = vpop.f32.mrf.mxu0
    %v197 = vadd.f32 %v158, %v196
    %v198 = vpop.f32.mrf.mxu0
    %199 = vdwg.mxu0
    %v200 = vmax.f32 %v197, 0.0
    %v201 = vpack.c.bf16 %v200, %v200
    %s202 = scalar_lea.vmem [#allocation2], 64
    %v203 = vld [vmem:[%s202] sm:$0xf]
    %v204 = vld [vmem:[%s202 + $0x4] sm:$0xf]
    %v205 = vld [vmem:[%s202 + $0x8] sm:$0xf]
    %v206 = vld [vmem:[%s202 + $0xc] sm:$0xf]
    %v207 = vld [vmem:[%s202 + $0x10] sm:$0xf]
    %v208 = vld [vmem:[%s202 + $0x14] sm:$0xf]
    %v209 = vld [vmem:[%s202 + $0x18] sm:$0xf]
    %v210 = vld [vmem:[%s202 + $0x1c] sm:$0xf]
    %s211 = scalar_lea.vmem %s4, 2
    %v212 = vld [vmem:[%s211] sm:$0x1]
    %v214 = vperm.slane %v212, 0
    %v224 = vunpack.c.l.b16 %v203
    %v225 = vunpack.c.l.b16 %v204
    %v226 = vunpack.c.l.b16 %v205
    %v227 = vunpack.c.l.b16 %v206
    %v228 = vunpack.c.l.b16 %v207
    %v229 = vunpack.c.l.b16 %v208
    %v230 = vunpack.c.l.b16 %v209
    %v231 = vunpack.c.l.b16 %v210
    %v232 = vpack.c.b16 %v225, %v224
    %v233 = vpack.c.b16 %v227, %v226
    %v234 = vpack.c.b16 %v229, %v228
    %v235 = vpack.c.b16 %v231, %v230
    %v241 = vsel %vm127, %v201, 0
    %243 = vmatpush.bf16.msra.mxu0 0
    %244 = vmatpush.bf16.msra.mxu0 0
    %245 = vmatpush.bf16.msra.mxu0 0
    %246 = vmatpush.bf16.msra.mxu0 0
    %247 = vmatpush.bf16.msra.mxu0 %v235
    %248 = vmatpush.bf16.msra.mxu0 %v234
    %249 = vmatpush.bf16.msra.mxu0 %v233
    %250 = vmatpush.bf16.msra.mxu0 %v232
    %251 = vmatmul.bf16.gmra.mxu0 %v241
    %v252 = vpop.f32.mrf.mxu0
    %v253 = vadd.f32 %v214, %v252
    %v254 = vpop.f32.mrf.mxu0
    %255 = vdwg.mxu0
    %v256 = vmax.f32 %v253, 0.0
    %v257 = vpack.c.bf16 %v256, %v256
    %v258 = vld [vmem:[%s5] sm:$0xf]
    %v259 = vld [vmem:[%s5 + $0x4] sm:$0xf]
    %v260 = vld [vmem:[%s5 + $0x8] sm:$0xf]
    %v261 = vld [vmem:[%s5 + $0xc] sm:$0xf]
    %v262 = vld [vmem:[%s5 + $0x10] sm:$0xf]
    %v263 = vld [vmem:[%s5 + $0x14] sm:$0xf]
    %v264 = vld [vmem:[%s5 + $0x18] sm:$0xf]
    %v265 = vld [vmem:[%s5 + $0x1c] sm:$0xf]
    %v266 = vld [vmem:[%s6] sm:$0x1]
    %v268 = vperm.slane %v266, 0
    %v278 = vunpack.c.l.b16 %v258
    %v279 = vunpack.c.l.b16 %v259
    %v280 = vunpack.c.l.b16 %v260
    %v281 = vunpack.c.l.b16 %v261
    %v282 = vunpack.c.l.b16 %v262
    %v283 = vunpack.c.l.b16 %v263
    %v284 = vunpack.c.l.b16 %v264
    %v285 = vunpack.c.l.b16 %v265
    %v286 = vpack.c.b16 %v279, %v278
    %v287 = vpack.c.b16 %v281, %v280
    %v288 = vpack.c.b16 %v283, %v282
    %v289 = vpack.c.b16 %v285, %v284
    %v295 = vsel %vm127, %v257, 0
    %297 = vmatpush.bf16.msra.mxu0 0
    %298 = vmatpush.bf16.msra.mxu0 0
    %299 = vmatpush.bf16.msra.mxu0 0
    %300 = vmatpush.bf16.msra.mxu0 0
    %301 = vmatpush.bf16.msra.mxu0 %v289
    %302 = vmatpush.bf16.msra.mxu0 %v288
    %303 = vmatpush.bf16.msra.mxu0 %v287
    %304 = vmatpush.bf16.msra.mxu0 %v286
    %305 = vmatmul.bf16.gmra.mxu0 %v295
    %v306 = vpop.f32.mrf.mxu0
    %v307 = vadd.f32 %v268, %v306
    %v308 = vpop.f32.mrf.mxu0
    %309 = vdwg.mxu0
    %v310 = vld [vmem:[%s7] sm:$0xf]
    %v311 = vld [vmem:[%s7 + $0x4] sm:$0xf]
    %v312 = vld [vmem:[%s7 + $0x8] sm:$0xf]
    %v313 = vld [vmem:[%s7 + $0xc] sm:$0xf]
    %v314 = vld [vmem:[%s7 + $0x10] sm:$0xf]
    %v315 = vld [vmem:[%s7 + $0x14] sm:$0xf]
    %v316 = vld [vmem:[%s7 + $0x18] sm:$0xf]
    %v317 = vld [vmem:[%s7 + $0x1c] sm:$0xf]
    %v318 = vld [vmem:[%s8] sm:$0x1]
    %v320 = vperm.slane %v318, 0
    %v330 = vunpack.c.l.b16 %v310
    %v331 = vunpack.c.l.b16 %v311
    %v332 = vunpack.c.l.b16 %v312
    %v333 = vunpack.c.l.b16 %v313
    %v334 = vunpack.c.l.b16 %v314
    %v335 = vunpack.c.l.b16 %v315
    %v336 = vunpack.c.l.b16 %v316
    %v337 = vunpack.c.l.b16 %v317
    %v338 = vpack.c.b16 %v331, %v330
    %v339 = vpack.c.b16 %v333, %v332
    %v340 = vpack.c.b16 %v335, %v334
    %v341 = vpack.c.b16 %v337, %v336
    %346 = vmatpush.bf16.msra.mxu0 0
    %347 = vmatpush.bf16.msra.mxu0 0
    %348 = vmatpush.bf16.msra.mxu0 0
    %349 = vmatpush.bf16.msra.mxu0 0
    %350 = vmatpush.bf16.msra.mxu0 %v341
    %351 = vmatpush.bf16.msra.mxu0 %v340
    %352 = vmatpush.bf16.msra.mxu0 %v339
    %353 = vmatpush.bf16.msra.mxu0 %v338
    %354 = vmatmul.bf16.gmra.mxu0 %v295
    %v355 = vpop.f32.mrf.mxu0
    %v356 = vadd.f32 %v320, %v355
    %v357 = vpop.f32.mrf.mxu0
    %358 = vdwg.mxu0
    %v359 = vsub.f32 %v50, %v307
    %v360 = vadd.f32 %v356, 0.0
    %v361 = vpack.c.bf16 %v359, %v359
    %s362 = scalar_lea.vmem %s1, 16
    %v363 = vld [vmem:[%s362] sm:$0xf]
    %v364 = vld [vmem:[%s362 + $0x4] sm:$0xf]
    %v365 = vld [vmem:[%s362 + $0x8] sm:$0xf]
    %v366 = vld [vmem:[%s362 + $0xc] sm:$0xf]
    %s367 = scalar_lea.vmem %s2, 1
    %v368 = vld [vmem:[%s367] sm:$0x1]
    %v370 = vperm.slane %v368, 0
    %v376 = vunpack.c.l.b16 %v363
    %v377 = vunpack.c.l.b16 %v364
    %v378 = vunpack.c.l.b16 %v365
    %v379 = vunpack.c.l.b16 %v366
    %v380 = vpack.c.b16 %v377, %v376
    %v381 = vpack.c.b16 %v379, %v378
    %v385 = vsel %vm72, %v361, 0
    %387 = vmatpush.bf16.msra.mxu0 0
    %388 = vmatpush.bf16.msra.mxu0 0
    %389 = vmatpush.bf16.msra.mxu0 0
    %390 = vmatpush.bf16.msra.mxu0 0
    %391 = vmatpush.bf16.msra.mxu0 0
    %392 = vmatpush.bf16.msra.mxu0 0
    %393 = vmatpush.bf16.msra.mxu0 %v381
    %394 = vmatpush.bf16.msra.mxu0 %v380
    %395 = vmatmul.bf16.gmra.mxu0 %v385
    %v396 = vpop.f32.mrf.mxu0
    %v397 = vadd.f32 %v370, %v396
    %v398 = vpop.f32.mrf.mxu0
    %399 = vdwg.mxu0
    %v400 = vmax.f32 %v397, 0.0
    %v401 = vpack.c.bf16 %v400, %v400
    %s402 = scalar_lea.vmem [#allocation2], 96
    %v403 = vld [vmem:[%s402] sm:$0xf]
    %v404 = vld [vmem:[%s402 + $0x4] sm:$0xf]
    %v405 = vld [vmem:[%s402 + $0x8] sm:$0xf]
    %v406 = vld [vmem:[%s402 + $0xc] sm:$0xf]
    %v407 = vld [vmem:[%s402 + $0x10] sm:$0xf]
    %v408 = vld [vmem:[%s402 + $0x14] sm:$0xf]
    %v409 = vld [vmem:[%s402 + $0x18] sm:$0xf]
    %v410 = vld [vmem:[%s402 + $0x1c] sm:$0xf]
    %s411 = scalar_lea.vmem %s4, 3
    %v412 = vld [vmem:[%s411] sm:$0x1]
    %v414 = vperm.slane %v412, 0
    %v424 = vunpack.c.l.b16 %v403
    %v425 = vunpack.c.l.b16 %v404
    %v426 = vunpack.c.l.b16 %v405
    %v427 = vunpack.c.l.b16 %v406
    %v428 = vunpack.c.l.b16 %v407
    %v429 = vunpack.c.l.b16 %v408
    %v430 = vunpack.c.l.b16 %v409
    %v431 = vunpack.c.l.b16 %v410
    %v432 = vpack.c.b16 %v425, %v424
    %v433 = vpack.c.b16 %v427, %v426
    %v434 = vpack.c.b16 %v429, %v428
    %v435 = vpack.c.b16 %v431, %v430
    %v441 = vsel %vm127, %v401, 0
    %443 = vmatpush.bf16.msra.mxu0 0
    %444 = vmatpush.bf16.msra.mxu0 0
    %445 = vmatpush.bf16.msra.mxu0 0
    %446 = vmatpush.bf16.msra.mxu0 0
    %447 = vmatpush.bf16.msra.mxu0 %v435
    %448 = vmatpush.bf16.msra.mxu0 %v434
    %449 = vmatpush.bf16.msra.mxu0 %v433
    %450 = vmatpush.bf16.msra.mxu0 %v432
    %451 = vmatmul.bf16.gmra.mxu0 %v441
    %v452 = vpop.f32.mrf.mxu0
    %v453 = vadd.f32 %v414, %v452
    %v454 = vpop.f32.mrf.mxu0
    %455 = vdwg.mxu0
    %v456 = vmax.f32 %v453, 0.0
    %v457 = vpack.c.bf16 %v456, %v456
    %s458 = scalar_lea.vmem [#allocation2], 128
    %v459 = vld [vmem:[%s458] sm:$0xf]
    %v460 = vld [vmem:[%s458 + $0x4] sm:$0xf]
    %v461 = vld [vmem:[%s458 + $0x8] sm:$0xf]
    %v462 = vld [vmem:[%s458 + $0xc] sm:$0xf]
    %v463 = vld [vmem:[%s458 + $0x10] sm:$0xf]
    %v464 = vld [vmem:[%s458 + $0x14] sm:$0xf]
    %v465 = vld [vmem:[%s458 + $0x18] sm:$0xf]
    %v466 = vld [vmem:[%s458 + $0x1c] sm:$0xf]
    %s467 = scalar_lea.vmem %s4, 4
    %v468 = vld [vmem:[%s467] sm:$0x1]
    %v470 = vperm.slane %v468, 0
    %v480 = vunpack.c.l.b16 %v459
    %v481 = vunpack.c.l.b16 %v460
    %v482 = vunpack.c.l.b16 %v461
    %v483 = vunpack.c.l.b16 %v462
    %v484 = vunpack.c.l.b16 %v463
    %v485 = vunpack.c.l.b16 %v464
    %v486 = vunpack.c.l.b16 %v465
    %v487 = vunpack.c.l.b16 %v466
    %v488 = vpack.c.b16 %v481, %v480
    %v489 = vpack.c.b16 %v483, %v482
    %v490 = vpack.c.b16 %v485, %v484
    %v491 = vpack.c.b16 %v487, %v486
    %v497 = vsel %vm127, %v457, 0
    %499 = vmatpush.bf16.msra.mxu0 0
    %500 = vmatpush.bf16.msra.mxu0 0
    %501 = vmatpush.bf16.msra.mxu0 0
    %502 = vmatpush.bf16.msra.mxu0 0
    %503 = vmatpush.bf16.msra.mxu0 %v491
    %504 = vmatpush.bf16.msra.mxu0 %v490
    %505 = vmatpush.bf16.msra.mxu0 %v489
    %506 = vmatpush.bf16.msra.mxu0 %v488
    %507 = vmatmul.bf16.gmra.mxu0 %v497
    %v508 = vpop.f32.mrf.mxu0
    %v509 = vadd.f32 %v470, %v508
    %v510 = vpop.f32.mrf.mxu0
    %511 = vdwg.mxu0
    %v512 = vmax.f32 %v509, 0.0
    %v513 = vpack.c.bf16 %v512, %v512
    %s514 = scalar_lea.vmem [#allocation2], 160
    %v515 = vld [vmem:[%s514] sm:$0xf]
    %v516 = vld [vmem:[%s514 + $0x4] sm:$0xf]
    %v517 = vld [vmem:[%s514 + $0x8] sm:$0xf]
    %v518 = vld [vmem:[%s514 + $0xc] sm:$0xf]
    %v519 = vld [vmem:[%s514 + $0x10] sm:$0xf]
    %v520 = vld [vmem:[%s514 + $0x14] sm:$0xf]
    %v521 = vld [vmem:[%s514 + $0x18] sm:$0xf]
    %v522 = vld [vmem:[%s514 + $0x1c] sm:$0xf]
    %s523 = scalar_lea.vmem %s4, 5
    %v524 = vld [vmem:[%s523] sm:$0x1]
    %v526 = vperm.slane %v524, 0
    %v536 = vunpack.c.l.b16 %v515
    %v537 = vunpack.c.l.b16 %v516
    %v538 = vunpack.c.l.b16 %v517
    %v539 = vunpack.c.l.b16 %v518
    %v540 = vunpack.c.l.b16 %v519
    %v541 = vunpack.c.l.b16 %v520
    %v542 = vunpack.c.l.b16 %v521
    %v543 = vunpack.c.l.b16 %v522
    %v544 = vpack.c.b16 %v537, %v536
    %v545 = vpack.c.b16 %v539, %v538
    %v546 = vpack.c.b16 %v541, %v540
    %v547 = vpack.c.b16 %v543, %v542
    %v553 = vsel %vm127, %v513, 0
    %555 = vmatpush.bf16.msra.mxu0 0
    %556 = vmatpush.bf16.msra.mxu0 0
    %557 = vmatpush.bf16.msra.mxu0 0
    %558 = vmatpush.bf16.msra.mxu0 0
    %559 = vmatpush.bf16.msra.mxu0 %v547
    %560 = vmatpush.bf16.msra.mxu0 %v546
    %561 = vmatpush.bf16.msra.mxu0 %v545
    %562 = vmatpush.bf16.msra.mxu0 %v544
    %563 = vmatmul.bf16.gmra.mxu0 %v553
    %v564 = vpop.f32.mrf.mxu0
    %v565 = vadd.f32 %v526, %v564
    %v566 = vpop.f32.mrf.mxu0
    %567 = vdwg.mxu0
    %v568 = vmax.f32 %v565, 0.0
    %v569 = vpack.c.bf16 %v568, %v568
    %s570 = scalar_lea.vmem %s5, 32
    %v571 = vld [vmem:[%s570] sm:$0xf]
    %v572 = vld [vmem:[%s570 + $0x4] sm:$0xf]
    %v573 = vld [vmem:[%s570 + $0x8] sm:$0xf]
    %v574 = vld [vmem:[%s570 + $0xc] sm:$0xf]
    %v575 = vld [vmem:[%s570 + $0x10] sm:$0xf]
    %v576 = vld [vmem:[%s570 + $0x14] sm:$0xf]
    %v577 = vld [vmem:[%s570 + $0x18] sm:$0xf]
    %v578 = vld [vmem:[%s570 + $0x1c] sm:$0xf]
    %s579 = scalar_lea.vmem %s6, 1
    %v580 = vld [vmem:[%s579] sm:$0x1]
    %v582 = vperm.slane %v580, 0
    %v592 = vunpack.c.l.b16 %v571
    %v593 = vunpack.c.l.b16 %v572
    %v594 = vunpack.c.l.b16 %v573
    %v595 = vunpack.c.l.b16 %v574
    %v596 = vunpack.c.l.b16 %v575
    %v597 = vunpack.c.l.b16 %v576
    %v598 = vunpack.c.l.b16 %v577
    %v599 = vunpack.c.l.b16 %v578
    %v600 = vpack.c.b16 %v593, %v592
    %v601 = vpack.c.b16 %v595, %v594
    %v602 = vpack.c.b16 %v597, %v596
    %v603 = vpack.c.b16 %v599, %v598
    %v609 = vsel %vm127, %v569, 0
    %611 = vmatpush.bf16.msra.mxu0 0
    %612 = vmatpush.bf16.msra.mxu0 0
    %613 = vmatpush.bf16.msra.mxu0 0
    %614 = vmatpush.bf16.msra.mxu0 0
    %615 = vmatpush.bf16.msra.mxu0 %v603
    %616 = vmatpush.bf16.msra.mxu0 %v602
    %617 = vmatpush.bf16.msra.mxu0 %v601
    %618 = vmatpush.bf16.msra.mxu0 %v600
    %619 = vmatmul.bf16.gmra.mxu0 %v609
    %v620 = vpop.f32.mrf.mxu0
    %v621 = vadd.f32 %v582, %v620
    %v622 = vpop.f32.mrf.mxu0
    %623 = vdwg.mxu0
    %s624 = scalar_lea.vmem %s7, 32
    %v625 = vld [vmem:[%s624] sm:$0xf]
    %v626 = vld [vmem:[%s624 + $0x4] sm:$0xf]
    %v627 = vld [vmem:[%s624 + $0x8] sm:$0xf]
    %v628 = vld [vmem:[%s624 + $0xc] sm:$0xf]
    %v629 = vld [vmem:[%s624 + $0x10] sm:$0xf]
    %v630 = vld [vmem:[%s624 + $0x14] sm:$0xf]
    %v631 = vld [vmem:[%s624 + $0x18] sm:$0xf]
    %v632 = vld [vmem:[%s624 + $0x1c] sm:$0xf]
    %s633 = scalar_lea.vmem %s8, 1
    %v634 = vld [vmem:[%s633] sm:$0x1]
    %v636 = vperm.slane %v634, 0
    %v646 = vunpack.c.l.b16 %v625
    %v647 = vunpack.c.l.b16 %v626
    %v648 = vunpack.c.l.b16 %v627
    %v649 = vunpack.c.l.b16 %v628
    %v650 = vunpack.c.l.b16 %v629
    %v651 = vunpack.c.l.b16 %v630
    %v652 = vunpack.c.l.b16 %v631
    %v653 = vunpack.c.l.b16 %v632
    %v654 = vpack.c.b16 %v647, %v646
    %v655 = vpack.c.b16 %v649, %v648
    %v656 = vpack.c.b16 %v651, %v650
    %v657 = vpack.c.b16 %v653, %v652
    %662 = vmatpush.bf16.msra.mxu0 0
    %663 = vmatpush.bf16.msra.mxu0 0
    %664 = vmatpush.bf16.msra.mxu0 0
    %665 = vmatpush.bf16.msra.mxu0 0
    %666 = vmatpush.bf16.msra.mxu0 %v657
    %667 = vmatpush.bf16.msra.mxu0 %v656
    %668 = vmatpush.bf16.msra.mxu0 %v655
    %669 = vmatpush.bf16.msra.mxu0 %v654
    %670 = vmatmul.bf16.gmra.mxu0 %v609
    %v671 = vpop.f32.mrf.mxu0
    %v672 = vadd.f32 %v636, %v671
    %v673 = vpop.f32.mrf.mxu0
    %674 = vdwg.mxu0
    %v675 = vsub.f32 %v359, %v621
    %v676 = vadd.f32 %v360, %v672
    %v677 = vpack.c.bf16 %v675, %v675
    %s678 = scalar_lea.vmem %s1, 32
    %v679 = vld [vmem:[%s678] sm:$0xf]
    %v680 = vld [vmem:[%s678 + $0x4] sm:$0xf]
    %v681 = vld [vmem:[%s678 + $0x8] sm:$0xf]
    %v682 = vld [vmem:[%s678 + $0xc] sm:$0xf]
    %s683 = scalar_lea.vmem %s2, 2
    %v684 = vld [vmem:[%s683] sm:$0x1]
    %v686 = vperm.slane %v684, 0
    %v692 = vunpack.c.l.b16 %v679
    %v693 = vunpack.c.l.b16 %v680
    %v694 = vunpack.c.l.b16 %v681
    %v695 = vunpack.c.l.b16 %v682
    %v696 = vpack.c.b16 %v693, %v692
    %v697 = vpack.c.b16 %v695, %v694
    %v701 = vsel %vm72, %v677, 0
    %703 = vmatpush.bf16.msra.mxu0 0
    %704 = vmatpush.bf16.msra.mxu0 0
    %705 = vmatpush.bf16.msra.mxu0 0
    %706 = vmatpush.bf16.msra.mxu0 0
    %707 = vmatpush.bf16.msra.mxu0 0
    %708 = vmatpush.bf16.msra.mxu0 0
    %709 = vmatpush.bf16.msra.mxu0 %v697
    %710 = vmatpush.bf16.msra.mxu0 %v696
    %711 = vmatmul.bf16.gmra.mxu0 %v701
    %v712 = vpop.f32.mrf.mxu0
    %v713 = vadd.f32 %v686, %v712
    %v714 = vpop.f32.mrf.mxu0
    %715 = vdwg.mxu0
    %v716 = vmax.f32 %v713, 0.0
    %v717 = vpack.c.bf16 %v716, %v716
    %s718 = scalar_lea.vmem [#allocation2], 192
    %v719 = vld [vmem:[%s718] sm:$0xf]
    %v720 = vld [vmem:[%s718 + $0x4] sm:$0xf]
    %v721 = vld [vmem:[%s718 + $0x8] sm:$0xf]
    %v722 = vld [vmem:[%s718 + $0xc] sm:$0xf]
    %v723 = vld [vmem:[%s718 + $0x10] sm:$0xf]
    %v724 = vld [vmem:[%s718 + $0x14] sm:$0xf]
    %v725 = vld [vmem:[%s718 + $0x18] sm:$0xf]
    %v726 = vld [vmem:[%s718 + $0x1c] sm:$0xf]
    %s727 = scalar_lea.vmem %s4, 6
    %v728 = vld [vmem:[%s727] sm:$0x1]
    %v730 = vperm.slane %v728, 0
    %v740 = vunpack.c.l.b16 %v719
    %v741 = vunpack.c.l.b16 %v720
    %v742 = vunpack.c.l.b16 %v721
    %v743 = vunpack.c.l.b16 %v722
    %v744 = vunpack.c.l.b16 %v723
    %v745 = vunpack.c.l.b16 %v724
    %v746 = vunpack.c.l.b16 %v725
    %v747 = vunpack.c.l.b16 %v726
    %v748 = vpack.c.b16 %v741, %v740
    %v749 = vpack.c.b16 %v743, %v742
    %v750 = vpack.c.b16 %v745, %v744
    %v751 = vpack.c.b16 %v747, %v746
    %v757 = vsel %vm127, %v717, 0
    %759 = vmatpush.bf16.msra.mxu0 0
    %760 = vmatpush.bf16.msra.mxu0 0
    %761 = vmatpush.bf16.msra.mxu0 0
    %762 = vmatpush.bf16.msra.mxu0 0
    %763 = vmatpush.bf16.msra.mxu0 %v751
    %764 = vmatpush.bf16.msra.mxu0 %v750
    %765 = vmatpush.bf16.msra.mxu0 %v749
    %766 = vmatpush.bf16.msra.mxu0 %v748
    %767 = vmatmul.bf16.gmra.mxu0 %v757
    %v768 = vpop.f32.mrf.mxu0
    %v769 = vadd.f32 %v730, %v768
    %v770 = vpop.f32.mrf.mxu0
    %771 = vdwg.mxu0
    %v772 = vmax.f32 %v769, 0.0
    %v773 = vpack.c.bf16 %v772, %v772
    %s774 = scalar_lea.vmem [#allocation2], 224
    %v775 = vld [vmem:[%s774] sm:$0xf]
    %v776 = vld [vmem:[%s774 + $0x4] sm:$0xf]
    %v777 = vld [vmem:[%s774 + $0x8] sm:$0xf]
    %v778 = vld [vmem:[%s774 + $0xc] sm:$0xf]
    %v779 = vld [vmem:[%s774 + $0x10] sm:$0xf]
    %v780 = vld [vmem:[%s774 + $0x14] sm:$0xf]
    %v781 = vld [vmem:[%s774 + $0x18] sm:$0xf]
    %v782 = vld [vmem:[%s774 + $0x1c] sm:$0xf]
    %s783 = scalar_lea.vmem %s4, 7
    %v784 = vld [vmem:[%s783] sm:$0x1]
    %v786 = vperm.slane %v784, 0
    %v796 = vunpack.c.l.b16 %v775
    %v797 = vunpack.c.l.b16 %v776
    %v798 = vunpack.c.l.b16 %v777
    %v799 = vunpack.c.l.b16 %v778
    %v800 = vunpack.c.l.b16 %v779
    %v801 = vunpack.c.l.b16 %v780
    %v802 = vunpack.c.l.b16 %v781
    %v803 = vunpack.c.l.b16 %v782
    %v804 = vpack.c.b16 %v797, %v796
    %v805 = vpack.c.b16 %v799, %v798
    %v806 = vpack.c.b16 %v801, %v800
    %v807 = vpack.c.b16 %v803, %v802
    %v813 = vsel %vm127, %v773, 0
    %815 = vmatpush.bf16.msra.mxu0 0
    %816 = vmatpush.bf16.msra.mxu0 0
    %817 = vmatpush.bf16.msra.mxu0 0
    %818 = vmatpush.bf16.msra.mxu0 0
    %819 = vmatpush.bf16.msra.mxu0 %v807
    %820 = vmatpush.bf16.msra.mxu0 %v806
    %821 = vmatpush.bf16.msra.mxu0 %v805
    %822 = vmatpush.bf16.msra.mxu0 %v804
    %823 = vmatmul.bf16.gmra.mxu0 %v813
    %v824 = vpop.f32.mrf.mxu0
    %v825 = vadd.f32 %v786, %v824
    %v826 = vpop.f32.mrf.mxu0
    %827 = vdwg.mxu0
    %v828 = vmax.f32 %v825, 0.0
    %v829 = vpack.c.bf16 %v828, %v828
    %s830 = scalar_lea.vmem [#allocation2], 256
    %v831 = vld [vmem:[%s830] sm:$0xf]
    %v832 = vld [vmem:[%s830 + $0x4] sm:$0xf]
    %v833 = vld [vmem:[%s830 + $0x8] sm:$0xf]
    %v834 = vld [vmem:[%s830 + $0xc] sm:$0xf]
    %v835 = vld [vmem:[%s830 + $0x10] sm:$0xf]
    %v836 = vld [vmem:[%s830 + $0x14] sm:$0xf]
    %v837 = vld [vmem:[%s830 + $0x18] sm:$0xf]
    %v838 = vld [vmem:[%s830 + $0x1c] sm:$0xf]
    %s839 = scalar_lea.vmem %s4, 8
    %v840 = vld [vmem:[%s839] sm:$0x1]
    %v842 = vperm.slane %v840, 0
    %v852 = vunpack.c.l.b16 %v831
    %v853 = vunpack.c.l.b16 %v832
    %v854 = vunpack.c.l.b16 %v833
    %v855 = vunpack.c.l.b16 %v834
    %v856 = vunpack.c.l.b16 %v835
    %v857 = vunpack.c.l.b16 %v836
    %v858 = vunpack.c.l.b16 %v837
    %v859 = vunpack.c.l.b16 %v838
    %v860 = vpack.c.b16 %v853, %v852
    %v861 = vpack.c.b16 %v855, %v854
    %v862 = vpack.c.b16 %v857, %v856
    %v863 = vpack.c.b16 %v859, %v858
    %v869 = vsel %vm127, %v829, 0
    %871 = vmatpush.bf16.msra.mxu0 0
    %872 = vmatpush.bf16.msra.mxu0 0
    %873 = vmatpush.bf16.msra.mxu0 0
    %874 = vmatpush.bf16.msra.mxu0 0
    %875 = vmatpush.bf16.msra.mxu0 %v863
    %876 = vmatpush.bf16.msra.mxu0 %v862
    %877 = vmatpush.bf16.msra.mxu0 %v861
    %878 = vmatpush.bf16.msra.mxu0 %v860
    %879 = vmatmul.bf16.gmra.mxu0 %v869
    %v880 = vpop.f32.mrf.mxu0
    %v881 = vadd.f32 %v842, %v880
    %v882 = vpop.f32.mrf.mxu0
    %883 = vdwg.mxu0
    %v884 = vmax.f32 %v881, 0.0
    %v885 = vpack.c.bf16 %v884, %v884
    %s886 = scalar_lea.vmem %s7, 64
    %v887 = vld [vmem:[%s886] sm:$0xf]
    %v888 = vld [vmem:[%s886 + $0x4] sm:$0xf]
    %v889 = vld [vmem:[%s886 + $0x8] sm:$0xf]
    %v890 = vld [vmem:[%s886 + $0xc] sm:$0xf]
    %v891 = vld [vmem:[%s886 + $0x10] sm:$0xf]
    %v892 = vld [vmem:[%s886 + $0x14] sm:$0xf]
    %v893 = vld [vmem:[%s886 + $0x18] sm:$0xf]
    %v894 = vld [vmem:[%s886 + $0x1c] sm:$0xf]
    %s895 = scalar_lea.vmem %s8, 2
    %v896 = vld [vmem:[%s895] sm:$0x1]
    %v898 = vperm.slane %v896, 0
    %v908 = vunpack.c.l.b16 %v887
    %v909 = vunpack.c.l.b16 %v888
    %v910 = vunpack.c.l.b16 %v889
    %v911 = vunpack.c.l.b16 %v890
    %v912 = vunpack.c.l.b16 %v891
    %v913 = vunpack.c.l.b16 %v892
    %v914 = vunpack.c.l.b16 %v893
    %v915 = vunpack.c.l.b16 %v894
    %v916 = vpack.c.b16 %v909, %v908
    %v917 = vpack.c.b16 %v911, %v910
    %v918 = vpack.c.b16 %v913, %v912
    %v919 = vpack.c.b16 %v915, %v914
    %v925 = vsel %vm127, %v885, 0
    %927 = vmatpush.bf16.msra.mxu0 0
    %928 = vmatpush.bf16.msra.mxu0 0
    %929 = vmatpush.bf16.msra.mxu0 0
    %930 = vmatpush.bf16.msra.mxu0 0
    %931 = vmatpush.bf16.msra.mxu0 %v919
    %932 = vmatpush.bf16.msra.mxu0 %v918
    %933 = vmatpush.bf16.msra.mxu0 %v917
    %934 = vmatpush.bf16.msra.mxu0 %v916
    %935 = vmatmul.bf16.gmra.mxu0 %v925
    %v936 = vpop.f32.mrf.mxu0
    %v937 = vadd.f32 %v898, %v936
    %v938 = vpop.f32.mrf.mxu0
    %939 = vdwg.mxu0
    %v940 = vadd.f32 %v676, %v937
    %vm941 = vcmask 130048
    %942 = vst.msk [vmem:[#allocation5] sm:$0xff] %vm941, %v940
    // Predicated region
    $region42: #{tpu_custom_call.1} parent=1 // pred_check
      _
    $region43: #{tpu_custom_call.1} parent=1 // pred_check_branch
      %944 = sbr.rel (0) target = $region45
    $region44: #{tpu_custom_call.1} parent=1 // pred_region
      %946 = vsyncadd [#allocation4], 0
      %s948 = sshll.u32 [#allocation5], 4
      %s949 = int_to_ptr.vmem [resolvable:$true] %s948
      %s950 = sshll.u32 %s9, 4
      %s951 = int_to_ptr.hbm [resolvable:$true] %s950
      %953 = dma.vmem_to_hbm [thread:$0]  %s949, 128, %s951, [#allocation4]
    $region45: #{tpu_custom_call.1} parent=1 // pred_fallthru
      _
    // Predicated region
    $region46: #{tpu_custom_call.1} parent=1 // pred_check
      _
    $region47: #{tpu_custom_call.1} parent=1 // pred_check_branch
      %955 = sbr.rel (0) target = $region49
    $region48: #{tpu_custom_call.1} parent=1 // pred_region
      %957 = dma.done [#allocation4], 128
    $region49: #{tpu_custom_call.1} parent=1 // pred_fallthru
      _
    %958 = vsyncpa [#allocation3], 1
    %959 = vsyncpa [#allocation4], 1

</llo_original>
